<compile_context>
chip_gen: v7x
topology: tpu7x:2x2x1
jax: 0.10.0
libtpu: 0.0.40
codegen_flags: <defaults>
</compile_context>

<pallas_src>
import functools

import numpy as np
import jax
import jax.numpy as jnp
from jax.experimental import pallas as pl
from jax.experimental.pallas import tpu as pltpu


# ------------------------------------------------------------------ kernel ---

def _classifier_kernel(x_ref, w_ref, b_ref, o_ref, *, act):
    """Fused linear projection + bias + (softmax|sigmoid|identity)."""
    # Native-dtype operands straight into the MXU, f32 accumulation.
    logits = jnp.dot(x_ref[...], w_ref[...],
                     preferred_element_type=jnp.float32)
    logits = logits + b_ref[...]                          # (1, C) broadcast, f32
    if act == "softmax":
        m = jnp.max(logits, axis=-1, keepdims=True)
        e = jnp.exp(logits - m)                           # EUP
        denom = jnp.sum(e, axis=-1, keepdims=True)        # XLU
        out = e * pl.reciprocal(denom, approx=True)       # EUP reciprocal
    elif act == "sigmoid":
        out = jax.nn.sigmoid(logits)
    else:                                                 # training: raw logits
        out = logits
    o_ref[...] = out.astype(o_ref.dtype)


# ----------------------------------------------------------------- wrapper ---

def _default_block_rows(n):
    """512-row tiles: ~85% of HBM roofline, small double-buffered VMEM footprint
    (<= ~4 MiB of x per buffer at dim_in=1024 f32), and >=2 grid steps for
    dual-TC sharding whenever the batch allows it."""
    return n if n <= 512 else 512


def classifier2d_forward(params, x, *, act_func="softmax", training=False,
                         block_rows=None, use_pallas=None):
    """x: (N, dim_in) -> (N, num_classes)."""
    if act_func not in ("softmax", "sigmoid"):
        raise NotImplementedError(
            "{} is not supported as an activation function.".format(act_func))

    n, dim_in = x.shape
    w = params["w"]                                       # (dim_in, num_classes)
    num_classes = w.shape[1]
    b = params["b"].reshape(1, num_classes).astype(jnp.float32)
    act = None if training else act_func

    # Tiny batches: launch/pipeline overhead dominates -- let XLA fuse.
    if use_pallas is None:
        use_pallas = n >= 64
    if not use_pallas:
        logits = (x @ w).astype(jnp.float32) + b
        if act == "softmax":
            out = jax.nn.softmax(logits, axis=-1)
        elif act == "sigmoid":
            out = jax.nn.sigmoid(logits)
        else:
            out = logits
        return out.astype(x.dtype)

    if block_rows is None:
        block_rows = _default_block_rows(n)
    block_rows = min(block_rows, n)
    grid = (pl.cdiv(n, block_rows),)                      # ragged last block OK

    kern = functools.partial(_classifier_kernel, act=act)
    return pl.pallas_call(
        kern,
        out_shape=jax.ShapeDtypeStruct((n, num_classes), x.dtype),
        grid=grid,
        in_specs=[
            pl.BlockSpec((block_rows, dim_in), lambda i: (i, 0)),
            # Constant index_map: single-buffer to save VMEM headroom.
            pl.BlockSpec((dim_in, num_classes), lambda i: (0, 0),
                         pipeline_mode=pl.Buffered(1)),
            pl.BlockSpec((1, num_classes), lambda i: (0, 0),
                         pipeline_mode=pl.Buffered(1)),
        ],
        out_specs=pl.BlockSpec((block_rows, num_classes), lambda i: (i, 0)),
        compiler_params=pltpu.CompilerParams(
            dimension_semantics=("parallel",)),
    )(x, w, b)


# ------------------------------------------------------------------ params ---

def init_classifier_params(key, dim_in, num_classes):
    """PyTorch nn.Linear default init; weight stored pre-transposed (dim_in, C)."""
    kw, kb = jax.random.split(key)
    bound = 1.0 / np.sqrt(dim_in)
    w = jax.random.uniform(kw, (dim_in, num_classes), jnp.float32, -bound, bound)
    b = jax.random.uniform(kb, (num_classes,), jnp.float32, -bound, bound)
    return {"w": w, "b": b}


# -------------------------------------------------------- pure-JAX reference --

def classifier2d_ref(params, x, *, act_func="softmax", training=False):
    logits = x @ params["w"] + params["b"]
    if training:
        return logits
    if act_func == "softmax":
        return jax.nn.softmax(logits, axis=-1)
    return jax.nn.sigmoid(logits)


# -------------------------------------------------------------------- main ---

if __name__ == "__main__":
    key = jax.random.PRNGKey(0)

    # ---- small-shape test (Pallas path forced to exercise the kernel) -------
    batch, dim_in, num_classes = 8, 32, 4
    kx, kp, key = jax.random.split(key, 3)
    x = jax.random.normal(kx, (batch, dim_in), jnp.float32)
    params = init_classifier_params(kp, dim_in, num_classes)

    # eval mode, softmax head (approx EUP reciprocal -> ~1e-3 tolerance)
    out_sm = jax.block_until_ready(
        classifier2d_forward(params, x, act_func="softmax", use_pallas=True))
    ref_sm = classifier2d_ref(params, x, act_func="softmax")
    assert out_sm.shape == (batch, num_classes), out_sm.shape
    np.testing.assert_allclose(np.asarray(out_sm), np.asarray(ref_sm),
                               rtol=2e-3, atol=2e-3)
    np.testing.assert_allclose(np.asarray(out_sm).sum(-1), np.ones(batch),
                               rtol=2e-3, atol=2e-3)

    # eval mode, sigmoid head
    out_sg = jax.block_until_ready(
        classifier2d_forward(params, x, act_func="sigmoid", use_pallas=True))
    ref_sg = classifier2d_ref(params, x, act_func="sigmoid")
    np.testing.assert_allclose(np.asarray(out_sg), np.asarray(ref_sg),
                               rtol=1e-5, atol=1e-5)

    # training mode: raw logits, no activation
    out_tr = jax.block_until_ready(
        classifier2d_forward(params, x, act_func="softmax", training=True,
                             use_pallas=True))
    ref_tr = classifier2d_ref(params, x, act_func="softmax", training=True)
    np.testing.assert_allclose(np.asarray(out_tr), np.asarray(ref_tr),
                               rtol=1e-5, atol=1e-5)

    # ---- ragged-grid test: non-divisible batch, cdiv grid + masked last block
    n2, d2, c2 = 200, 128, 4
    kx2, kp2, key = jax.random.split(key, 3)
    x2 = jax.random.normal(kx2, (n2, d2), jnp.float32)
    params2 = init_classifier_params(kp2, d2, c2)
    out2 = jax.block_until_ready(
        classifier2d_forward(params2, x2, act_func="softmax",
                             block_rows=128, use_pallas=True))
    ref2 = classifier2d_ref(params2, x2, act_func="softmax")
    np.testing.assert_allclose(np.asarray(out2), np.asarray(ref2),
                               rtol=2e-3, atol=2e-3)

    # ---- tiny-batch auto-dispatch falls back to the fused XLA path ----------
    out_small = jax.block_until_ready(
        classifier2d_forward(params, x, act_func="softmax"))
    np.testing.assert_allclose(np.asarray(out_small), np.asarray(ref_sm),
                               rtol=1e-5, atol=1e-5)

    print("KERNEL_OK")
</pallas_src>

<mosaic_0001>
module attributes {stable_mosaic.version = 11 : i64} {
  func.func @_classifier_kernel(%arg0: i32, %arg1: memref<8x32xf32, #tpu.memory_space<vmem>>, %arg2: memref<32x4xf32, #tpu.memory_space<vmem>>, %arg3: memref<1x4xf32, #tpu.memory_space<vmem>>, %arg4: memref<8x4xf32, #tpu.memory_space<vmem>>) attributes {dimension_semantics = [#tpu.dimension_semantics<parallel>], iteration_bounds = array<i64: 1>, scalar_prefetch = 0 : i64, scratch_operands = 0 : i64, tpu.core_type = #tpu.core_type<tc>, window_params = [{transform_indices = @transform_0, window_bounds = array<i64: 8, 32>}, {pipeline_mode = #tpu.pipeline_mode<synchronous>, transform_indices = @transform_1, window_bounds = array<i64: 32, 4>}, {pipeline_mode = #tpu.pipeline_mode<synchronous>, transform_indices = @transform_2, window_bounds = array<i64: 1, 4>}, {transform_indices = @transform_3, window_bounds = array<i64: 8, 4>}]} {
    %c0 = arith.constant 0 : index
    %c0_0 = arith.constant 0 : index
    %0 = vector.load %arg1[%c0, %c0_0] : memref<8x32xf32, #tpu.memory_space<vmem>>, vector<8x32xf32>
    %c0_1 = arith.constant 0 : index
    %c0_2 = arith.constant 0 : index
    %1 = vector.load %arg2[%c0_1, %c0_2] : memref<32x4xf32, #tpu.memory_space<vmem>>, vector<32x4xf32>
    %cst = arith.constant dense<0.000000e+00> : vector<8x4xf32>
    %2 = tpu.matmul %0, %1, %cst {dimension_numbers = #tpu.dot_dimension_numbers<[1], [0], [0], [1], [0, 0, 1, 1], [], []>} : vector<8x32xf32>, vector<32x4xf32>, vector<8x4xf32> -> vector<8x4xf32>
    %c0_3 = arith.constant 0 : index
    %c0_4 = arith.constant 0 : index
    %3 = vector.load %arg3[%c0_3, %c0_4] : memref<1x4xf32, #tpu.memory_space<vmem>>, vector<1x4xf32>
    %4 = vector.broadcast %3 : vector<1x4xf32> to vector<8x4xf32>
    %5 = arith.addf %2, %4 : vector<8x4xf32>
    %cst_5 = arith.constant dense<0xFF800000> : vector<8xf32>
    %6 = vector.multi_reduction <maximumf>, %5, %cst_5 [1] : vector<8x4xf32> to vector<8xf32>
    %7 = vector.shape_cast %6 : vector<8xf32> to vector<8x1xf32>
    %8 = vector.broadcast %7 : vector<8x1xf32> to vector<8x4xf32>
    %9 = arith.subf %5, %8 : vector<8x4xf32>
    %10 = math.exp %9 : vector<8x4xf32>
    %cst_6 = arith.constant dense<0.000000e+00> : vector<8xf32>
    %11 = vector.multi_reduction <add>, %10, %cst_6 [1] : vector<8x4xf32> to vector<8xf32>
    %12 = vector.shape_cast %11 : vector<8xf32> to vector<8x1xf32>
    %13 = tpu.reciprocal %12 {approx = true} : vector<8x1xf32> -> vector<8x1xf32>
    %14 = vector.broadcast %13 : vector<8x1xf32> to vector<8x4xf32>
    %15 = arith.mulf %10, %14 : vector<8x4xf32>
    %c0_7 = arith.constant 0 : index
    %c0_8 = arith.constant 0 : index
    %16 = vector.load %arg4[%c0_7, %c0_8] : memref<8x4xf32, #tpu.memory_space<vmem>>, vector<8x4xf32>
    tpu.vector_store %arg4[%c0_7, %c0_8], %15 {strides = array<i32>} : memref<8x4xf32, #tpu.memory_space<vmem>>, vector<8x4xf32>,
    return
  }
  func.func @transform_0(%arg0: i32) -> (i32, i32) {
    %c0_i32 = arith.constant 0 : i32
    %c0_i32_0 = arith.constant 0 : i32
    return %arg0, %c0_i32 : i32, i32
  }
  func.func @transform_1(%arg0: i32) -> (i32, i32) {
    %c0_i32 = arith.constant 0 : i32
    %c0_i32_0 = arith.constant 0 : i32
    %c0_i32_1 = arith.constant 0 : i32
    return %c0_i32, %c0_i32_0 : i32, i32
  }
  func.func @transform_2(%arg0: i32) -> (i32, i32) {
    %c0_i32 = arith.constant 0 : i32
    %c0_i32_0 = arith.constant 0 : i32
    %c0_i32_1 = arith.constant 0 : i32
    return %c0_i32, %c0_i32_0 : i32, i32
  }
  func.func @transform_3(%arg0: i32) -> (i32, i32) {
    %c0_i32 = arith.constant 0 : i32
    %c0_i32_0 = arith.constant 0 : i32
    return %arg0, %c0_i32 : i32, i32
  }
}

</mosaic_0001>

<llo_original>
// kernel: tpu_custom_call.1
$region0: #{tpu_custom_call.1}
  #allocation0 [shape = 'u32[]', space=smem, size = 0x4, offset = 0x4, fixed_abs, tag = 'smem constant byte address 0x4 - core index']
  #allocation1 [shape = 'u32[144,128]{1,0:T(1,128)}', space=vmem, size = 0x12000, scoped, tag = 'internal scratch']
  %s0 = inlined_call_operand.vmem [shape: f32[8,32], index: 0, kind: input, shape index: {}]
  %s1 = inlined_call_operand.vmem [shape: f32[32,4], index: 1, kind: input, shape index: {}]
  %s2 = inlined_call_operand.vmem [shape: f32[1,4], index: 2, kind: input, shape index: {}]
  %s3 = inlined_call_operand.vmem [shape: f32[8,4], index: 3, kind: output, shape index: {}]
  %s4 = sld [smem:[#allocation0]]
  $region22: #{tpu_custom_call.1} parent=0
    _
  %s6 = ssub.s32 1, %s4
  %s7 = scalar_select 0, %s6, %s4
  // Predicated region
  $region2: #{tpu_custom_call.1} parent=0 // pred_check
    _
  $region3: #{tpu_custom_call.1} parent=0 // pred_check_branch
    %9 = sbr.rel (0) target = $region5
  $region4: #{tpu_custom_call.1} parent=0 // pred_region
    _
  $region5: #{tpu_custom_call.1} parent=0 // pred_fallthru
    _
  // Predicated region
  $region6: #{tpu_custom_call.1} parent=0 // pred_check
    _
  $region7: #{tpu_custom_call.1} parent=0 // pred_check_branch
    %11 = sbr.rel (0) target = $region9
  $region8: #{tpu_custom_call.1} parent=0 // pred_region
    _
  $region9: #{tpu_custom_call.1} parent=0 // pred_fallthru
    _
  // Predicated region
  $region10: #{tpu_custom_call.1} parent=0 // pred_check
    _
  $region11: #{tpu_custom_call.1} parent=0 // pred_check_branch
    %13 = sbr.rel (0) target = $region13
  $region12: #{tpu_custom_call.1} parent=0 // pred_region
    _
  $region13: #{tpu_custom_call.1} parent=0 // pred_fallthru
    _
  %v14 = vld [vmem:[%s0] sm:$0xff]
  %v15 = vld [vmem:[%s1] sm:$0xff]
  %v16 = vld [vmem:[%s1 + $0x8] sm:$0xff]
  %v17 = vld [vmem:[%s1 + $0x10] sm:$0xff]
  %v18 = vld [vmem:[%s1 + $0x18] sm:$0xff]
  %v19 = vld [vmem:[%s2] sm:$0x1]
  %v21 = vlaneseq
  %v22 = vshrl.u32 %v21, 7
  %v23 = vsub.s32 0, %v22
  %v24 = vrot.slane %v19, %v23
  %vm26 = vcmask 261120
  %v28 = vsel %vm26, %v14, 0
  %30 = vmatprep.subr.mxu0 0.0
  %31 = vmatpush1.msra.mxu0 %v15
  %32 = vmatprep.subr.mxu0 0.0
  %33 = vmatpush1.msra.mxu0 %v16
  %34 = vmatprep.subr.mxu0 0.0
  %35 = vmatpush1.msra.mxu0 %v17
  %36 = vmatprep.subr.mxu0 0.0
  %37 = vmatpush1.msra.mxu0 %v18
  %38 = vmatprep.subr.mxu0 0.0
  %39 = vmatpush1.msra.mxu0 0.0
  %40 = vmatprep.subr.mxu0 0.0
  %41 = vmatpush1.msra.mxu0 0.0
  %42 = vmatprep.subr.mxu0 0.0
  %43 = vmatpush1.msra.mxu0 0.0
  %44 = vmatprep.subr.mxu0 0.0
  %45 = vmatpush1.msra.mxu0 0.0
  %46 = vmatprep.subr.mxu0 0.0
  %47 = vmatpush1.msra.mxu0 0.0
  %48 = vmatprep.subr.mxu0 0.0
  %49 = vmatpush1.msra.mxu0 0.0
  %50 = vmatprep.subr.mxu0 0.0
  %51 = vmatpush1.msra.mxu0 0.0
  %52 = vmatprep.subr.mxu0 0.0
  %53 = vmatpush1.msra.mxu0 0.0
  %54 = vmatprep.subr.mxu0 0.0
  %55 = vmatpush1.msra.mxu0 0.0
  %56 = vmatprep.subr.mxu0 0.0
  %57 = vmatpush1.msra.mxu0 0.0
  %58 = vmatprep.subr.mxu0 0.0
  %59 = vmatpush1.msra.mxu0 0.0
  %60 = vmatprep.subr.mxu0 0.0
  %61 = vmatpush1.msra.mxu0 0.0
  %62 = vmatprep.subr.mxu0 0.0
  %63 = vmatpush1.msra.mxu0 0.0
  %64 = vmatprep.subr.mxu0 0.0
  %65 = vmatpush1.msra.mxu0 0.0
  %66 = vmatprep.subr.mxu0 0.0
  %67 = vmatpush1.msra.mxu0 0.0
  %68 = vmatprep.subr.mxu0 0.0
  %69 = vmatpush1.msra.mxu0 0.0
  %70 = vmatprep.subr.mxu0 0.0
  %71 = vmatpush1.msra.mxu0 0.0
  %72 = vmatprep.subr.mxu0 0.0
  %73 = vmatpush1.msra.mxu0 0.0
  %74 = vmatprep.subr.mxu0 0.0
  %75 = vmatpush1.msra.mxu0 0.0
  %76 = vmatprep.subr.mxu0 0.0
  %77 = vmatpush1.msra.mxu0 0.0
  %78 = vmatprep.subr.mxu0 0.0
  %79 = vmatpush1.msra.mxu0 0.0
  %80 = vmatprep.subr.mxu0 0.0
  %81 = vmatpush1.msra.mxu0 0.0
  %82 = vmatprep.subr.mxu0 0.0
  %83 = vmatpush1.msra.mxu0 0.0
  %84 = vmatprep.subr.mxu0 0.0
  %85 = vmatpush1.msra.mxu0 0.0
  %86 = vmatprep.subr.mxu0 0.0
  %87 = vmatpush1.msra.mxu0 0.0
  %88 = vmatprep.subr.mxu0 0.0
  %89 = vmatpush1.msra.mxu0 0.0
  %90 = vmatprep.subr.mxu0 0.0
  %91 = vmatpush1.msra.mxu0 0.0
  %92 = vmatprep.subr.mxu0 0.0
  %93 = vmatpush1.msra.mxu0 0.0
  %94 = vmatprep.mubr.f32.mxu0 0.0
  %95 = vmatmul.mubr.f32.gmra.mrb[0].mxu0 %v28
  %v96 = vpop.f32.mrb[0].mxu0
  %v97 = vadd.f32 %v24, %v96
  %v98 = vpop.f32.mrb[0].mxu0
  %99 = vdwg.mxu0
  %vm100 = vcmask 31744
  %v101 = vsel %vm100, %v97, -inf
  %102 = vmax.xlane.f32.xlu0 %v101
  %v103 = vpop.xlane.xlu0 %102
  %v104 = vsub.f32 %v97, %v103
  %v105 = vmul.f32 %v104, 1.442695
  %v106 = vpow.pop %v105
  %v107 = vsel %vm100, %v106, 0.0
  %108 = vadd.xlane.f32.xlu0 %v107
  %v109 = vpop.xlane.xlu0 %108
  %v110 = vrcp.pop %v109
  %v111 = vmul.f32 %v106, %v110
  %112 = vst.msk [vmem:[%s3] sm:$0xff] %vm100, %v111
  // Predicated region
  $region14: #{tpu_custom_call.1} parent=0 // pred_check
    _
  $region15: #{tpu_custom_call.1} parent=0 // pred_check_branch
    %114 = sbr.rel (0) target = $region17
  $region16: #{tpu_custom_call.1} parent=0 // pred_region
    _
  $region17: #{tpu_custom_call.1} parent=0 // pred_fallthru
    _
  // Predicated region
  $region18: #{tpu_custom_call.1} parent=0 // pred_check
    _
  $region19: #{tpu_custom_call.1} parent=0 // pred_check_branch
    %116 = sbr.rel (0) target = $region21
  $region20: #{tpu_custom_call.1} parent=0 // pred_region
    _
  $region21: #{tpu_custom_call.1} parent=0 // pred_fallthru
    _

</llo_original>
